<compile_context>
chip_gen: v6e
topology: v6e:2x2x1
jax: 0.10.0
libtpu: 0.0.40
codegen_flags: <defaults>
</compile_context>

<pallas_src>
import functools

import jax
import jax.numpy as jnp
from jax.experimental import pallas as pl
from jax.experimental.pallas import tpu as pltpu


# ----------------------------------------------------------------------------
# Fused ConvHead kernel (batch_tile sequences per grid step)
# ----------------------------------------------------------------------------
def _conv_head_kernel(*refs, act_meta, final_meta, L, S, b_tile, pad_max,
                      c_max, cin0, leaky_slope, compute_dtype, use_mask,
                      accumulate_taps):
    # refs = [x, (mask), w0, b0, w1, b1, ..., wT_final, b_final, o, buf]
    #   x     : (b_tile, L, cin0)
    #   mask  : (M, 1) f32, 1 on data rows, 0 on inter-element halo rows
    #   w_n   : (K_n*Cin_n, Cout_n) im2col-reshaped hidden conv weights
    #   b_n   : (1, Cout_n) f32
    #   wT    : (K_f, 3M, Cin_f) transposed fused (last conv o modes) weight
    #   bT    : (3M, 1) f32
    #   o     : (3M, M) with M = b_tile*S - 2*pad_max (positions on lanes)
    #   buf   : (b_tile*S, c_max) VMEM scratch, compute_dtype
    idx = 0
    x_ref = refs[idx]; idx += 1
    mask_ref = None
    if use_mask:
        mask_ref = refs[idx]; idx += 1
    n_act = len(act_meta)
    w_refs = refs[idx:idx + 2 * n_act:2]
    b_refs = refs[idx + 1:idx + 2 * n_act:2]
    idx += 2 * n_act
    wT_ref = refs[idx]
    bT_ref = refs[idx + 1]
    o_ref = refs[idx + 2]
    buf_ref = refs[idx + 3]

    R = b_tile * S                  # scratch rows
    M = R - 2 * pad_max             # rows computed per layer (data + inner halos)

    # (1) Zero halo rows.  Cheap (O(b_tile*pad_max) rows per step, amortized
    #     over b_tile sequences); kept per-step for megacore safety.
    if pad_max > 0:
        buf_ref[0:pad_max, :] = jnp.zeros((pad_max, c_max), compute_dtype)
        for e in range(b_tile):
            start = e * S + pad_max + L
            rows = 2 * pad_max if e < b_tile - 1 else pad_max
            buf_ref[start:start + rows, :] = jnp.zeros((rows, c_max),
                                                       compute_dtype)

    # (2) Stage the input into the per-element data rows (also casts to the
    #     compute dtype).  Static-offset stores only.
    x = x_ref[...].astype(compute_dtype)                 # (b_tile, L, cin0)
    for e in range(b_tile):
        base = e * S + pad_max
        buf_ref[base:base + L, 0:cin0] = x[e]

    mask = mask_ref[...] if use_mask else None           # (M, 1) f32

    # (3) Hidden conv layers: 'same' conv + bias + LeakyReLU, masked write-back.
    for n, (K, cin, cout) in enumerate(act_meta):
        pad = (K - 1) // 2
        taps = [buf_ref[pad_max - pad + k:pad_max - pad + k + M, 0:cin]
                for k in range(K)]
        if accumulate_taps:
            # v7x-friendly: K small matmuls accumulated (MRB accumulates in place).
            y = None
            for k in range(K):
                t = jax.lax.dot_general(
                    taps[k], w_refs[n][k * cin:(k + 1) * cin, :],
                    dimension_numbers=(((1,), (0,)), ((), ())),
                    preferred_element_type=jnp.float32)
                y = t if y is None else y + t
        else:
            # v5e/v6e-friendly: one im2col matmul (single MRF drain).
            xcol = taps[0] if K == 1 else jnp.concatenate(taps, axis=-1)
            y = jax.lax.dot_general(
                xcol, w_refs[n][...],
                dimension_numbers=(((1,), (0,)), ((), ())),
                preferred_element_type=jnp.float32)      # (M, cout) f32
        y = y + b_refs[n][...]
        y = jnp.where(y >= 0, y, leaky_slope * y)        # f32 LeakyReLU
        if use_mask:
            y = y * mask            # keep inter-element halo rows exactly zero
        buf_ref[pad_max:pad_max + M, 0:cout] = y.astype(compute_dtype)

    # (4) Final layer = (last hidden conv) o (num_modes 1x1 convs), fused at
    #     trace time.  Computed transposed (channels, positions) so the store
    #     is lane-dense along positions.  Inner-halo columns are junk and get
    #     dropped in the wrapper.
    Kf, cinf, coutf = final_meta
    padf = (Kf - 1) // 2
    acc = None
    for k in range(Kf):
        xs = buf_ref[pad_max - padf + k:pad_max - padf + k + M, 0:cinf]
        t = jax.lax.dot_general(
            wT_ref[k], xs,
            dimension_numbers=(((1,), (1,)), ((), ())),
            preferred_element_type=jnp.float32)          # (coutf, M)
        acc = t if acc is None else acc + t
    acc = acc + bT_ref[...]                              # (coutf, 1) f32 bias
    o_ref[...] = acc.astype(o_ref.dtype)


# ----------------------------------------------------------------------------
# Parameter init (deterministic, PyTorch Conv1d-style uniform fan-in bounds)
# ----------------------------------------------------------------------------
def init_conv_head_params(key, in_features, hidden_sizes, kernel_sizes,
                          num_modes):
    params = {"convs": [], "num_modes": num_modes}
    cin = in_features
    for h, k in zip(hidden_sizes, kernel_sizes):
        key, wk, bk = jax.random.split(key, 3)
        bound = 1.0 / (cin * k) ** 0.5
        w = jax.random.uniform(wk, (k, cin, h), jnp.float32, -bound, bound)
        b = jax.random.uniform(bk, (h,), jnp.float32, -bound, bound)
        params["convs"].append((w, b))
        cin = h
    mw, mb = [], []
    for _ in range(num_modes):
        key, wk, bk = jax.random.split(key, 3)
        bound = 1.0 / cin ** 0.5
        mw.append(jax.random.uniform(wk, (1, cin, 3), jnp.float32, -bound, bound))
        mb.append(jax.random.uniform(bk, (3,), jnp.float32, -bound, bound))
    params["modes"] = (jnp.concatenate(mw, axis=-1),
                       jnp.concatenate(mb, axis=-1))
    return params


# ----------------------------------------------------------------------------
# ConvHead forward (single fused pallas_call, batch-tiled grid)
# ----------------------------------------------------------------------------
def conv_head_forward(params, embedding, seq_lengths, *,
                      compute_dtype=jnp.bfloat16, batch_tile=None,
                      accumulate_taps=False):
    # seq_lengths is only consumed by the disabled masked-BN / qr_reg paths.
    del seq_lengths
    B, L, cin0 = embedding.shape
    assert L >= 3, "need at least 3 positions to drop first/last"
    convs = params["convs"]
    mw, mb = params["modes"]                 # (1, C_last, 3M), (3M,)
    num_modes = params["num_modes"]

    # Fold the mode 1x1 convs into the last hidden conv (exact: no activation
    # between them).
    w_last, b_last = convs[-1]               # (K, C_prev, C_last), (C_last,)
    w_final = jnp.einsum("kpc,cj->kpj", w_last, mw[0])   # (K, C_prev, 3M)
    b_final = b_last @ mw[0] + mb                        # (3M,)

    act_meta = []
    for (w, _b) in convs[:-1]:
        K, cin, cout = w.shape
        assert K % 2 == 1, "only odd kernel sizes (symmetric 'same' padding)"
        act_meta.append((K, cin, cout))
    Kf, cinf, coutf = w_final.shape
    assert Kf % 2 == 1
    final_meta = (Kf, cinf, coutf)

    pad_max = max([(K - 1) // 2 for (K, _, _) in act_meta] + [(Kf - 1) // 2])
    c_max = max([cin0] + [cout for (_, _, cout) in act_meta])
    S = L + 2 * pad_max                      # per-element stride inside scratch

    # Batch tile: target ~256 matmul rows per step (MXU M side on v6e/v7x).
    # Note for v7x: an even grid length keeps both TensorCores busy.
    if batch_tile is None:
        batch_tile = max(1, -(-256 // S))
    batch_tile = max(1, min(batch_tile, B))
    G = -(-B // batch_tile)
    B_pad = G * batch_tile
    x = embedding
    if B_pad != B:
        x = jnp.pad(x, ((0, B_pad - B), (0, 0), (0, 0)))

    R = batch_tile * S
    M = R - 2 * pad_max
    use_mask = (pad_max > 0) and (batch_tile > 1)

    args = [x]
    in_specs = [pl.BlockSpec((batch_tile, L, cin0), lambda g: (g, 0, 0))]

    def _full_spec(arr):
        return pl.BlockSpec(arr.shape, lambda g, _n=arr.ndim: (0,) * _n)

    if use_mask:
        rows = jnp.arange(M) + pad_max
        off = rows % S
        mask = ((off >= pad_max) & (off < pad_max + L)).astype(jnp.float32)
        mask = mask.reshape(M, 1)
        args.append(mask)
        in_specs.append(_full_spec(mask))

    for (w, b) in convs[:-1]:
        K, cin, cout = w.shape
        w2 = w.reshape(K * cin, cout).astype(compute_dtype)   # im2col weight
        b2 = b.reshape(1, cout).astype(jnp.float32)
        args += [w2, b2]
        in_specs += [_full_spec(w2), _full_spec(b2)]

    wT = jnp.transpose(w_final, (0, 2, 1)).astype(compute_dtype)  # (Kf,3M,Cin)
    bT = b_final.reshape(coutf, 1).astype(jnp.float32)
    args += [wT, bT]
    in_specs += [_full_spec(wT), _full_spec(bT)]

    kernel = functools.partial(
        _conv_head_kernel, act_meta=tuple(act_meta), final_meta=final_meta,
        L=L, S=S, b_tile=batch_tile, pad_max=pad_max, c_max=c_max, cin0=cin0,
        leaky_slope=0.01, compute_dtype=compute_dtype, use_mask=use_mask,
        accumulate_taps=accumulate_taps)

    out = pl.pallas_call(
        kernel,
        out_shape=jax.ShapeDtypeStruct((G, coutf, M), embedding.dtype),
        grid=(G,),
        in_specs=in_specs,
        out_specs=pl.BlockSpec((None, coutf, M), lambda g: (g, 0, 0)),
        scratch_shapes=[pltpu.VMEM((R, c_max), compute_dtype)],
        compiler_params=pltpu.CompilerParams(
            dimension_semantics=("parallel",),
            vmem_limit_bytes=48 * 1024 * 1024),
    )(*args)

    # Column c of a step's output corresponds to (element e, position j) with
    # c = e*S + j; columns j in [L, S) are inter-element halo junk.
    out = jnp.pad(out, ((0, 0), (0, 0), (0, 2 * pad_max)))   # (G, 3M, b_tile*S)
    out = out.reshape(G, coutf, batch_tile, S)[..., :L]       # drop halo cols
    out = out.transpose(0, 2, 1, 3).reshape(B_pad, coutf, L)
    out = out[:B, :, 1:L - 1]                                 # (B, 3M, L-2)
    # channels are mode-major, matching torch.stack(..., dim=1).permute(0,1,3,2)
    modes = out.reshape(B, num_modes, 3, L - 2).transpose(0, 1, 3, 2)
    return modes


# ----------------------------------------------------------------------------
# Pure-JAX reference (independent path via lax.conv_general_dilated, f32)
# ----------------------------------------------------------------------------
def _conv1d_same_ref(x, w, b, leaky_slope=None):
    x_ncl = jnp.transpose(x, (0, 2, 1))                  # (B, Cin, L)
    w_oik = jnp.transpose(w, (2, 1, 0))                  # (Cout, Cin, K)
    y = jax.lax.conv_general_dilated(
        x_ncl, w_oik, window_strides=(1,), padding="SAME",
        dimension_numbers=("NCH", "OIH", "NCH"))
    y = y + b[None, :, None]
    if leaky_slope is not None:
        y = jnp.where(y >= 0, y, leaky_slope * y)
    return jnp.transpose(y, (0, 2, 1))


def conv_head_reference(params, embedding):
    B, L, _ = embedding.shape
    out = embedding
    n_layers = len(params["convs"])
    for n, (w, b) in enumerate(params["convs"]):
        slope = 0.01 if n != n_layers - 1 else None
        out = _conv1d_same_ref(out, w, b, leaky_slope=slope)
    mw, mb = params["modes"]
    out = _conv1d_same_ref(out, mw, mb)
    num_modes = params["num_modes"]
    out = out.reshape(B, L, num_modes, 3).transpose(0, 2, 1, 3)
    return out[:, :, 1:-1, :]


if __name__ == "__main__":
    key = jax.random.PRNGKey(0)

    # ---- Config A: default auto batch tile, f32 + bf16 paths ----
    B, L, in_features = 2, 16, 32
    hidden_sizes, kernel_sizes, num_modes = [32, 16], [3, 3], 2
    key, k_emb, k_par = jax.random.split(key, 3)
    emb = jax.random.normal(k_emb, (B, L, in_features), jnp.float32)
    seq_lengths = jnp.array([L, L - 3], dtype=jnp.int32)
    params = init_conv_head_params(k_par, in_features, hidden_sizes,
                                   kernel_sizes, num_modes)
    ref = conv_head_reference(params, emb)

    out_f32 = jax.block_until_ready(conv_head_forward(
        params, emb, seq_lengths, compute_dtype=jnp.float32))
    assert out_f32.shape == (B, num_modes, L - 2, 3), out_f32.shape
    assert jnp.allclose(out_f32, ref, atol=5e-4, rtol=5e-4), (
        float(jnp.max(jnp.abs(out_f32 - ref))))

    out_bf16 = jax.block_until_ready(conv_head_forward(
        params, emb, seq_lengths, compute_dtype=jnp.bfloat16))
    assert out_bf16.shape == (B, num_modes, L - 2, 3), out_bf16.shape
    assert jnp.allclose(out_bf16, ref, atol=5e-2, rtol=5e-2), (
        float(jnp.max(jnp.abs(out_bf16 - ref))))

    # ---- Config B: batch padding (B=5, tile=2 -> 3 grid steps), K=5 first
    # layer (pad_max=2), 3 modes, hidden width > in_features; also exercise
    # the v7x-preferred accumulated-tap path. ----
    B2, L2, in2 = 5, 16, 24
    hidden2, ks2, modes2 = [40, 16], [5, 3], 3
    key, k_emb2, k_par2 = jax.random.split(key, 3)
    emb2 = jax.random.normal(k_emb2, (B2, L2, in2), jnp.float32)
    seqlens2 = jnp.full((B2,), L2, dtype=jnp.int32)
    params2 = init_conv_head_params(k_par2, in2, hidden2, ks2, modes2)
    ref2 = conv_head_reference(params2, emb2)

    out_b = jax.block_until_ready(conv_head_forward(
        params2, emb2, seqlens2, compute_dtype=jnp.float32, batch_tile=2))
    assert out_b.shape == (B2, modes2, L2 - 2, 3), out_b.shape
    assert jnp.allclose(out_b, ref2, atol=5e-4, rtol=5e-4), (
        float(jnp.max(jnp.abs(out_b - ref2))))

    out_b_acc = jax.block_until_ready(conv_head_forward(
        params2, emb2, seqlens2, compute_dtype=jnp.float32, batch_tile=2,
        accumulate_taps=True))
    assert jnp.allclose(out_b_acc, ref2, atol=5e-4, rtol=5e-4), (
        float(jnp.max(jnp.abs(out_b_acc - ref2))))

    print("KERNEL_OK")
</pallas_src>

<mosaic_0001>
module attributes {stable_mosaic.version = 11 : i64} {
  func.func @_conv_head_kernel(%arg0: i32, %arg1: memref<2x16x32xf32, #tpu.memory_space<vmem>>, %arg2: memref<34x1xf32, #tpu.memory_space<vmem>>, %arg3: memref<96x32xf32, #tpu.memory_space<vmem>>, %arg4: memref<1x32xf32, #tpu.memory_space<vmem>>, %arg5: memref<3x6x32xf32, #tpu.memory_space<vmem>>, %arg6: memref<6x1xf32, #tpu.memory_space<vmem>>, %arg7: memref<1x6x34xf32, #tpu.memory_space<vmem>>, %arg8: memref<36x32xf32, #tpu.memory_space<vmem>>) attributes {dimension_semantics = [#tpu.dimension_semantics<parallel>], iteration_bounds = array<i64: 1>, scalar_prefetch = 0 : i64, scratch_operands = 1 : i64, tpu.core_type = #tpu.core_type<tc>, window_params = [{transform_indices = @transform_0, window_bounds = array<i64: 2, 16, 32>}, {pipeline_mode = #tpu.pipeline_mode<synchronous>, transform_indices = @transform_1, window_bounds = array<i64: 34, 1>}, {pipeline_mode = #tpu.pipeline_mode<synchronous>, transform_indices = @transform_2, window_bounds = array<i64: 96, 32>}, {pipeline_mode = #tpu.pipeline_mode<synchronous>, transform_indices = @transform_3, window_bounds = array<i64: 1, 32>}, {pipeline_mode = #tpu.pipeline_mode<synchronous>, transform_indices = @transform_4, window_bounds = array<i64: 3, 6, 32>}, {pipeline_mode = #tpu.pipeline_mode<synchronous>, transform_indices = @transform_5, window_bounds = array<i64: 6, 1>}, {transform_indices = @transform_6, window_bounds = array<i64: 1, 6, 34>}]} {
    %cst = arith.constant 0.000000e+00 : f32
    %0 = vector.broadcast %cst : f32 to vector<1x32xf32>
    %c0 = arith.constant 0 : index
    %c0_0 = arith.constant 0 : index
    %1 = vector.load %arg8[%c0, %c0_0] : memref<36x32xf32, #tpu.memory_space<vmem>>, vector<1x32xf32>
    tpu.vector_store %arg8[%c0, %c0_0], %0 {strides = array<i32>} : memref<36x32xf32, #tpu.memory_space<vmem>>, vector<1x32xf32>,
    %cst_1 = arith.constant 0.000000e+00 : f32
    %2 = vector.broadcast %cst_1 : f32 to vector<2x32xf32>
    %c17 = arith.constant 17 : index
    %c0_2 = arith.constant 0 : index
    %3 = vector.load %arg8[%c17, %c0_2] : memref<36x32xf32, #tpu.memory_space<vmem>>, vector<2x32xf32>
    tpu.vector_store %arg8[%c17, %c0_2], %2 {strides = array<i32>} : memref<36x32xf32, #tpu.memory_space<vmem>>, vector<2x32xf32>,
    %cst_3 = arith.constant 0.000000e+00 : f32
    %4 = vector.broadcast %cst_3 : f32 to vector<1x32xf32>
    %c35 = arith.constant 35 : index
    %c0_4 = arith.constant 0 : index
    %5 = vector.load %arg8[%c35, %c0_4] : memref<36x32xf32, #tpu.memory_space<vmem>>, vector<1x32xf32>
    tpu.vector_store %arg8[%c35, %c0_4], %4 {strides = array<i32>} : memref<36x32xf32, #tpu.memory_space<vmem>>, vector<1x32xf32>,
    %c0_5 = arith.constant 0 : index
    %c0_6 = arith.constant 0 : index
    %c0_7 = arith.constant 0 : index
    %6 = vector.load %arg1[%c0_5, %c0_6, %c0_7] : memref<2x16x32xf32, #tpu.memory_space<vmem>>, vector<2x16x32xf32>
    %7 = vector.extract_strided_slice %6 {offsets = [0, 0, 0], sizes = [1, 16, 32], strides = [1, 1, 1]} : vector<2x16x32xf32> to vector<1x16x32xf32>
    %8 = vector.shape_cast %7 : vector<1x16x32xf32> to vector<16x32xf32>
    %c1 = arith.constant 1 : index
    %c0_8 = arith.constant 0 : index
    %9 = vector.load %arg8[%c1, %c0_8] : memref<36x32xf32, #tpu.memory_space<vmem>>, vector<16x32xf32>
    tpu.vector_store %arg8[%c1, %c0_8], %8 {strides = array<i32>} : memref<36x32xf32, #tpu.memory_space<vmem>>, vector<16x32xf32>,
    %10 = vector.extract_strided_slice %6 {offsets = [1, 0, 0], sizes = [1, 16, 32], strides = [1, 1, 1]} : vector<2x16x32xf32> to vector<1x16x32xf32>
    %11 = vector.shape_cast %10 : vector<1x16x32xf32> to vector<16x32xf32>
    %c19 = arith.constant 19 : index
    %c0_9 = arith.constant 0 : index
    %12 = vector.load %arg8[%c19, %c0_9] : memref<36x32xf32, #tpu.memory_space<vmem>>, vector<16x32xf32>
    tpu.vector_store %arg8[%c19, %c0_9], %11 {strides = array<i32>} : memref<36x32xf32, #tpu.memory_space<vmem>>, vector<16x32xf32>,
    %c0_10 = arith.constant 0 : index
    %c0_11 = arith.constant 0 : index
    %13 = vector.load %arg2[%c0_10, %c0_11] : memref<34x1xf32, #tpu.memory_space<vmem>>, vector<34x1xf32>
    %c0_12 = arith.constant 0 : index
    %c0_13 = arith.constant 0 : index
    %14 = vector.load %arg8[%c0_12, %c0_13] : memref<36x32xf32, #tpu.memory_space<vmem>>, vector<34x32xf32>
    %c1_14 = arith.constant 1 : index
    %c0_15 = arith.constant 0 : index
    %15 = vector.load %arg8[%c1_14, %c0_15] : memref<36x32xf32, #tpu.memory_space<vmem>>, vector<34x32xf32>
    %c2 = arith.constant 2 : index
    %c0_16 = arith.constant 0 : index
    %16 = vector.load %arg8[%c2, %c0_16] : memref<36x32xf32, #tpu.memory_space<vmem>>, vector<34x32xf32>
    %17 = tpu.concatenate %14, %15, %16 in 1 : vector<34x32xf32>, vector<34x32xf32>, vector<34x32xf32> -> vector<34x96xf32>
    %c0_17 = arith.constant 0 : index
    %c0_18 = arith.constant 0 : index
    %18 = vector.load %arg3[%c0_17, %c0_18] : memref<96x32xf32, #tpu.memory_space<vmem>>, vector<96x32xf32>
    %cst_19 = arith.constant dense<0.000000e+00> : vector<34x32xf32>
    %19 = tpu.matmul %17, %18, %cst_19 {dimension_numbers = #tpu.dot_dimension_numbers<[1], [0], [0], [1], [0, 0, 1, 1], [], []>} : vector<34x96xf32>, vector<96x32xf32>, vector<34x32xf32> -> vector<34x32xf32>
    %c0_20 = arith.constant 0 : index
    %c0_21 = arith.constant 0 : index
    %20 = vector.load %arg4[%c0_20, %c0_21] : memref<1x32xf32, #tpu.memory_space<vmem>>, vector<1x32xf32>
    %21 = vector.broadcast %20 : vector<1x32xf32> to vector<34x32xf32>
    %22 = arith.addf %19, %21 : vector<34x32xf32>
    %cst_22 = arith.constant 0.000000e+00 : f32
    %23 = vector.broadcast %cst_22 : f32 to vector<34x32xf32>
    %24 = arith.cmpf oge, %22, %23 : vector<34x32xf32>
    %cst_23 = arith.constant 0.00999999977 : f32
    %25 = vector.broadcast %cst_23 : f32 to vector<34x32xf32>
    %26 = arith.mulf %25, %22 : vector<34x32xf32>
    %27 = arith.select %24, %22, %26 : vector<34x32xi1>, vector<34x32xf32>
    %28 = vector.broadcast %13 : vector<34x1xf32> to vector<34x32xf32>
    %29 = arith.mulf %27, %28 : vector<34x32xf32>
    %c1_24 = arith.constant 1 : index
    %c0_25 = arith.constant 0 : index
    %30 = vector.load %arg8[%c1_24, %c0_25] : memref<36x32xf32, #tpu.memory_space<vmem>>, vector<34x32xf32>
    tpu.vector_store %arg8[%c1_24, %c0_25], %29 {strides = array<i32>} : memref<36x32xf32, #tpu.memory_space<vmem>>, vector<34x32xf32>,
    %c0_26 = arith.constant 0 : index
    %c0_27 = arith.constant 0 : index
    %31 = vector.load %arg8[%c0_26, %c0_27] : memref<36x32xf32, #tpu.memory_space<vmem>>, vector<34x32xf32>
    %c0_28 = arith.constant 0 : index
    %c0_29 = arith.constant 0 : index
    %c0_30 = arith.constant 0 : index
    %32 = vector.load %arg5[%c0_28, %c0_29, %c0_30] : memref<3x6x32xf32, #tpu.memory_space<vmem>>, vector<1x6x32xf32>
    %33 = vector.shape_cast %32 : vector<1x6x32xf32> to vector<6x32xf32>
    %cst_31 = arith.constant dense<0.000000e+00> : vector<6x34xf32>
    %34 = tpu.matmul %33, %31, %cst_31 {dimension_numbers = #tpu.dot_dimension_numbers<[1], [1], [0], [0], [0, 0, 1, 0], [], []>} : vector<6x32xf32>, vector<34x32xf32>, vector<6x34xf32> -> vector<6x34xf32>
    %c1_32 = arith.constant 1 : index
    %c0_33 = arith.constant 0 : index
    %35 = vector.load %arg8[%c1_32, %c0_33] : memref<36x32xf32, #tpu.memory_space<vmem>>, vector<34x32xf32>
    %c1_34 = arith.constant 1 : index
    %c0_35 = arith.constant 0 : index
    %c0_36 = arith.constant 0 : index
    %36 = vector.load %arg5[%c1_34, %c0_35, %c0_36] : memref<3x6x32xf32, #tpu.memory_space<vmem>>, vector<1x6x32xf32>
    %37 = vector.shape_cast %36 : vector<1x6x32xf32> to vector<6x32xf32>
    %cst_37 = arith.constant dense<0.000000e+00> : vector<6x34xf32>
    %38 = tpu.matmul %37, %35, %cst_37 {dimension_numbers = #tpu.dot_dimension_numbers<[1], [1], [0], [0], [0, 0, 1, 0], [], []>} : vector<6x32xf32>, vector<34x32xf32>, vector<6x34xf32> -> vector<6x34xf32>
    %39 = arith.addf %34, %38 : vector<6x34xf32>
    %c2_38 = arith.constant 2 : index
    %c0_39 = arith.constant 0 : index
    %40 = vector.load %arg8[%c2_38, %c0_39] : memref<36x32xf32, #tpu.memory_space<vmem>>, vector<34x32xf32>
    %c2_40 = arith.constant 2 : index
    %c0_41 = arith.constant 0 : index
    %c0_42 = arith.constant 0 : index
    %41 = vector.load %arg5[%c2_40, %c0_41, %c0_42] : memref<3x6x32xf32, #tpu.memory_space<vmem>>, vector<1x6x32xf32>
    %42 = vector.shape_cast %41 : vector<1x6x32xf32> to vector<6x32xf32>
    %cst_43 = arith.constant dense<0.000000e+00> : vector<6x34xf32>
    %43 = tpu.matmul %42, %40, %cst_43 {dimension_numbers = #tpu.dot_dimension_numbers<[1], [1], [0], [0], [0, 0, 1, 0], [], []>} : vector<6x32xf32>, vector<34x32xf32>, vector<6x34xf32> -> vector<6x34xf32>
    %44 = arith.addf %39, %43 : vector<6x34xf32>
    %c0_44 = arith.constant 0 : index
    %c0_45 = arith.constant 0 : index
    %45 = vector.load %arg6[%c0_44, %c0_45] : memref<6x1xf32, #tpu.memory_space<vmem>>, vector<6x1xf32>
    %46 = vector.broadcast %45 : vector<6x1xf32> to vector<6x34xf32>
    %47 = arith.addf %44, %46 : vector<6x34xf32>
    %c0_46 = arith.constant 0 : index
    %c0_47 = arith.constant 0 : index
    %c0_48 = arith.constant 0 : index
    %48 = vector.load %arg7[%c0_46, %c0_47, %c0_48] : memref<1x6x34xf32, #tpu.memory_space<vmem>>, vector<1x6x34xf32>
    %49 = vector.shape_cast %48 : vector<1x6x34xf32> to vector<6x34xf32>
    %50 = vector.shape_cast %47 : vector<6x34xf32> to vector<1x6x34xf32>
    tpu.vector_store %arg7[%c0_46, %c0_47, %c0_48], %50 {strides = array<i32>} : memref<1x6x34xf32, #tpu.memory_space<vmem>>, vector<1x6x34xf32>,
    return
  }
  func.func @transform_0(%arg0: i32) -> (i32, i32, i32) {
    %c0_i32 = arith.constant 0 : i32
    %c0_i32_0 = arith.constant 0 : i32
    %c0_i32_1 = arith.constant 0 : i32
    return %arg0, %c0_i32, %c0_i32_0 : i32, i32, i32
  }
  func.func @transform_1(%arg0: i32) -> (i32, i32) {
    %c0_i32 = arith.constant 0 : i32
    %c0_i32_0 = arith.constant 0 : i32
    %c0_i32_1 = arith.constant 0 : i32
    return %c0_i32, %c0_i32_0 : i32, i32
  }
  func.func @transform_2(%arg0: i32) -> (i32, i32) {
    %c0_i32 = arith.constant 0 : i32
    %c0_i32_0 = arith.constant 0 : i32
    %c0_i32_1 = arith.constant 0 : i32
    return %c0_i32, %c0_i32_0 : i32, i32
  }
  func.func @transform_3(%arg0: i32) -> (i32, i32) {
    %c0_i32 = arith.constant 0 : i32
    %c0_i32_0 = arith.constant 0 : i32
    %c0_i32_1 = arith.constant 0 : i32
    return %c0_i32, %c0_i32_0 : i32, i32
  }
  func.func @transform_4(%arg0: i32) -> (i32, i32, i32) {
    %c0_i32 = arith.constant 0 : i32
    %c0_i32_0 = arith.constant 0 : i32
    %c0_i32_1 = arith.constant 0 : i32
    %c0_i32_2 = arith.constant 0 : i32
    return %c0_i32, %c0_i32_0, %c0_i32_1 : i32, i32, i32
  }
  func.func @transform_5(%arg0: i32) -> (i32, i32) {
    %c0_i32 = arith.constant 0 : i32
    %c0_i32_0 = arith.constant 0 : i32
    %c0_i32_1 = arith.constant 0 : i32
    return %c0_i32, %c0_i32_0 : i32, i32
  }
  func.func @transform_6(%arg0: i32) -> (i32, i32, i32) {
    %c0_i32 = arith.constant 0 : i32
    %c0_i32_0 = arith.constant 0 : i32
    %c0_i32_1 = arith.constant 0 : i32
    return %arg0, %c0_i32, %c0_i32_0 : i32, i32, i32
  }
}

</mosaic_0001>

<llo_original>
// kernel: tpu_custom_call.1
$region0: #{tpu_custom_call.1}
  #allocation0 [shape = 'u32[]', space=smem, size = 0x4, offset = 0x4, fixed_abs, tag = 'smem constant byte address 0x4 - core index']
  #allocation1 [shape = 'u32[144,128]{1,0:T(1,128)}', space=vmem, size = 0x12000, scoped, tag = 'internal scratch']
  #allocation2 [shape = 'f32[36,32]{1,0:T(8,128)}', space=vmem, size = 0x5000, scoped, tag = 'scratch operand']
  %s0 = inlined_call_operand.vmem [shape: f32[2,16,32], index: 0, kind: input, shape index: {}]
  %s1 = inlined_call_operand.vmem [shape: f32[34,1], index: 1, kind: input, shape index: {}]
  %s2 = inlined_call_operand.vmem [shape: f32[96,32], index: 2, kind: input, shape index: {}]
  %s3 = inlined_call_operand.vmem [shape: f32[1,32], index: 3, kind: input, shape index: {}]
  %s4 = inlined_call_operand.vmem [shape: f32[3,6,32], index: 4, kind: input, shape index: {}]
  %s5 = inlined_call_operand.vmem [shape: f32[6,1], index: 5, kind: input, shape index: {}]
  %s6 = inlined_call_operand.vmem [shape: f32[1,6,34], index: 6, kind: output, shape index: {}]
  %s7 = sld [smem:[#allocation0]]
  $region34: #{tpu_custom_call.1} parent=0
    _
  %s9 = ssub.s32 1, %s7
  %s10 = scalar_select 0, %s9, %s7
  // Predicated region
  $region2: #{tpu_custom_call.1} parent=0 // pred_check
    _
  $region3: #{tpu_custom_call.1} parent=0 // pred_check_branch
    %12 = sbr.rel (0) target = $region5
  $region4: #{tpu_custom_call.1} parent=0 // pred_region
    _
  $region5: #{tpu_custom_call.1} parent=0 // pred_fallthru
    _
  // Predicated region
  $region6: #{tpu_custom_call.1} parent=0 // pred_check
    _
  $region7: #{tpu_custom_call.1} parent=0 // pred_check_branch
    %14 = sbr.rel (0) target = $region9
  $region8: #{tpu_custom_call.1} parent=0 // pred_region
    _
  $region9: #{tpu_custom_call.1} parent=0 // pred_fallthru
    _
  // Predicated region
  $region10: #{tpu_custom_call.1} parent=0 // pred_check
    _
  $region11: #{tpu_custom_call.1} parent=0 // pred_check_branch
    %16 = sbr.rel (0) target = $region13
  $region12: #{tpu_custom_call.1} parent=0 // pred_region
    _
  $region13: #{tpu_custom_call.1} parent=0 // pred_fallthru
    _
  // Predicated region
  $region14: #{tpu_custom_call.1} parent=0 // pred_check
    _
  $region15: #{tpu_custom_call.1} parent=0 // pred_check_branch
    %18 = sbr.rel (0) target = $region17
  $region16: #{tpu_custom_call.1} parent=0 // pred_region
    _
  $region17: #{tpu_custom_call.1} parent=0 // pred_fallthru
    _
  // Predicated region
  $region18: #{tpu_custom_call.1} parent=0 // pred_check
    _
  $region19: #{tpu_custom_call.1} parent=0 // pred_check_branch
    %20 = sbr.rel (0) target = $region21
  $region20: #{tpu_custom_call.1} parent=0 // pred_region
    _
  $region21: #{tpu_custom_call.1} parent=0 // pred_fallthru
    _
  // Predicated region
  $region22: #{tpu_custom_call.1} parent=0 // pred_check
    _
  $region23: #{tpu_custom_call.1} parent=0 // pred_check_branch
    %22 = sbr.rel (0) target = $region25
  $region24: #{tpu_custom_call.1} parent=0 // pred_region
    _
  $region25: #{tpu_custom_call.1} parent=0 // pred_fallthru
    _
  %vm23 = vcmask 253952
  %24 = vst.msk [vmem:[#allocation2] sm:$0x1] %vm23, 0.0
  %vm25 = vcmask 254976
  %26 = vst.msk [vmem:[#allocation2 + $0x11] sm:$0x3] %vm25, 0.0
  %27 = vst.msk [vmem:[#allocation2 + $0x23] sm:$0x1] %vm23, 0.0
  %v28 = vld [vmem:[%s0] sm:$0xff]
  %v29 = vld [vmem:[%s0 + $0x8] sm:$0xff]
  %v30 = vld [vmem:[%s0 + $0x10] sm:$0xff]
  %v31 = vld [vmem:[%s0 + $0x18] sm:$0xff]
  %vm32 = vcmask 261120
  %33 = vst.msk [vmem:[#allocation2 + $0x1] sm:$0xff] %vm32, %v28
  %34 = vst.msk [vmem:[#allocation2 + $0x9] sm:$0xff] %vm32, %v29
  %35 = vst.msk [vmem:[#allocation2 + $0x13] sm:$0xff] %vm32, %v30
  %36 = vst.msk [vmem:[#allocation2 + $0x1b] sm:$0xff] %vm32, %v31
  %v37 = vld [vmem:[%s1] sm:$0xff]
  %v38 = vld [vmem:[%s1 + $0x8] sm:$0xff]
  %v39 = vld [vmem:[%s1 + $0x10] sm:$0xff]
  %v40 = vld [vmem:[%s1 + $0x18] sm:$0xff]
  %v41 = vld [vmem:[%s1 + $0x20] sm:$0x3]
  %v42 = vld [vmem:[#allocation2] sm:$0xff]
  %v43 = vld [vmem:[#allocation2 + $0x8] sm:$0xff]
  %v44 = vld [vmem:[#allocation2 + $0x10] sm:$0xff]
  %v45 = vld [vmem:[#allocation2 + $0x18] sm:$0xff]
  %v46 = vld [vmem:[#allocation2 + $0x20] sm:$0x3]
  %v47 = vld [vmem:[#allocation2 + $0x1] sm:$0xff]
  %v48 = vld [vmem:[#allocation2 + $0x9] sm:$0xff]
  %v49 = vld [vmem:[#allocation2 + $0x11] sm:$0xff]
  %v50 = vld [vmem:[#allocation2 + $0x19] sm:$0xff]
  %v51 = vld [vmem:[#allocation2 + $0x21] sm:$0x3]
  %v52 = vld [vmem:[#allocation2 + $0x2] sm:$0xff]
  %v53 = vld [vmem:[#allocation2 + $0xa] sm:$0xff]
  %v54 = vld [vmem:[#allocation2 + $0x12] sm:$0xff]
  %v55 = vld [vmem:[#allocation2 + $0x1a] sm:$0xff]
  %v56 = vld [vmem:[#allocation2 + $0x22] sm:$0x3]
  %62 = vrot.lane.b32.xlu0 %v47, 32
  %v63 = vpop.permute.xlu0 %62
  %64 = vrot.lane.b32.xlu0 %v48, 32
  %v65 = vpop.permute.xlu0 %64
  %66 = vrot.lane.b32.xlu0 %v49, 32
  %v67 = vpop.permute.xlu0 %66
  %68 = vrot.lane.b32.xlu0 %v50, 32
  %v69 = vpop.permute.xlu0 %68
  %70 = vrot.lane.b32.xlu0 %v51, 32
  %v71 = vpop.permute.xlu0 %70
  %82 = vrot.lane.b32.xlu0 %v52, 64
  %v83 = vpop.permute.xlu0 %82
  %84 = vrot.lane.b32.xlu0 %v53, 64
  %v85 = vpop.permute.xlu0 %84
  %86 = vrot.lane.b32.xlu0 %v54, 64
  %v87 = vpop.permute.xlu0 %86
  %88 = vrot.lane.b32.xlu0 %v55, 64
  %v89 = vpop.permute.xlu0 %88
  %90 = vrot.lane.b32.xlu0 %v56, 64
  %v91 = vpop.permute.xlu0 %90
  %v97 = vsel %vm32, %v42, %v63
  %v98 = vsel %vm32, %v43, %v65
  %v99 = vsel %vm32, %v44, %v67
  %v100 = vsel %vm32, %v45, %v69
  %v101 = vsel %vm32, %v46, %v71
  %vm102 = vcmask 523264
  %v103 = vsel %vm102, %v97, %v83
  %v104 = vsel %vm102, %v98, %v85
  %v105 = vsel %vm102, %v99, %v87
  %v106 = vsel %vm102, %v100, %v89
  %v107 = vsel %vm102, %v101, %v91
  %v108 = vld [vmem:[%s2] sm:$0xff]
  %v109 = vld [vmem:[%s2 + $0x8] sm:$0xff]
  %v110 = vld [vmem:[%s2 + $0x10] sm:$0xff]
  %v111 = vld [vmem:[%s2 + $0x18] sm:$0xff]
  %v112 = vld [vmem:[%s2 + $0x20] sm:$0xff]
  %v113 = vld [vmem:[%s2 + $0x28] sm:$0xff]
  %v114 = vld [vmem:[%s2 + $0x30] sm:$0xff]
  %v115 = vld [vmem:[%s2 + $0x38] sm:$0xff]
  %v116 = vld [vmem:[%s2 + $0x40] sm:$0xff]
  %v117 = vld [vmem:[%s2 + $0x48] sm:$0xff]
  %v118 = vld [vmem:[%s2 + $0x50] sm:$0xff]
  %v119 = vld [vmem:[%s2 + $0x58] sm:$0xff]
  %v120 = vld [vmem:[%s3] sm:$0x1]
  %v122 = vlaneseq
  %v123 = vshrl.u32 %v122, 7
  %v124 = vsub.s32 0, %v123
  %v125 = vrot.slane %v120, %v124
  %vm127 = vcmask 785408
  %v129 = vsel %vm127, %v103, 0
  %v132 = vsel %vm127, %v104, 0
  %v135 = vsel %vm127, %v105, 0
  %v138 = vsel %vm127, %v106, 0
  %v141 = vsel %vm127, %v107, 0
  %143 = vmatprep.subr.mxu0 0.0
  %144 = vmatpush1.msra.mxu0 0.0
  %145 = vmatprep.subr.mxu0 0.0
  %146 = vmatpush1.msra.mxu0 0.0
  %147 = vmatprep.subr.mxu0 0.0
  %148 = vmatpush1.msra.mxu0 0.0
  %149 = vmatprep.subr.mxu0 0.0
  %150 = vmatpush1.msra.mxu0 0.0
  %151 = vmatprep.subr.mxu0 0.0
  %152 = vmatpush1.msra.mxu0 %v119
  %153 = vmatprep.subr.mxu0 0.0
  %154 = vmatpush1.msra.mxu0 %v118
  %155 = vmatprep.subr.mxu0 0.0
  %156 = vmatpush1.msra.mxu0 %v117
  %157 = vmatprep.subr.mxu0 0.0
  %158 = vmatpush1.msra.mxu0 %v116
  %159 = vmatprep.subr.mxu0 0.0
  %160 = vmatpush1.msra.mxu0 %v115
  %161 = vmatprep.subr.mxu0 0.0
  %162 = vmatpush1.msra.mxu0 %v114
  %163 = vmatprep.subr.mxu0 0.0
  %164 = vmatpush1.msra.mxu0 %v113
  %165 = vmatprep.subr.mxu0 0.0
  %166 = vmatpush1.msra.mxu0 %v112
  %167 = vmatprep.subr.mxu0 0.0
  %168 = vmatpush1.msra.mxu0 %v111
  %169 = vmatprep.subr.mxu0 0.0
  %170 = vmatpush1.msra.mxu0 %v110
  %171 = vmatprep.subr.mxu0 0.0
  %172 = vmatpush1.msra.mxu0 %v109
  %173 = vmatprep.subr.mxu0 0.0
  %174 = vmatpush1.msra.mxu0 %v108
  %175 = vmatprep.subr.mxu0 0.0
  %176 = vmatpush2.msra.mxu0 0.0
  %177 = vmatprep.subr.mxu0 0.0
  %178 = vmatpush2.msra.mxu0 0.0
  %179 = vmatprep.subr.mxu0 0.0
  %180 = vmatpush2.msra.mxu0 0.0
  %181 = vmatprep.subr.mxu0 0.0
  %182 = vmatpush2.msra.mxu0 0.0
  %183 = vmatprep.subr.mxu0 0.0
  %184 = vmatpush2.msra.mxu0 0.0
  %185 = vmatprep.subr.mxu0 0.0
  %186 = vmatpush2.msra.mxu0 0.0
  %187 = vmatprep.subr.mxu0 0.0
  %188 = vmatpush2.msra.mxu0 0.0
  %189 = vmatprep.subr.mxu0 0.0
  %190 = vmatpush2.msra.mxu0 0.0
  %191 = vmatprep.subr.mxu0 0.0
  %192 = vmatpush2.msra.mxu0 0.0
  %193 = vmatprep.subr.mxu0 0.0
  %194 = vmatpush2.msra.mxu0 0.0
  %195 = vmatprep.subr.mxu0 0.0
  %196 = vmatpush2.msra.mxu0 0.0
  %197 = vmatprep.subr.mxu0 0.0
  %198 = vmatpush2.msra.mxu0 0.0
  %199 = vmatprep.subr.mxu0 0.0
  %200 = vmatpush2.msra.mxu0 0.0
  %201 = vmatprep.subr.mxu0 0.0
  %202 = vmatpush2.msra.mxu0 0.0
  %203 = vmatprep.subr.mxu0 0.0
  %204 = vmatpush2.msra.mxu0 0.0
  %205 = vmatprep.subr.mxu0 0.0
  %206 = vmatpush2.msra.mxu0 0.0
  %207 = vmatprep.mubr.f32.mxu0 0.0
  %208 = vmatmul.mubr.f32.gmra.mxu0 %v129
  %v209 = vpop.f32.mrf.mxu0
  %v210 = vadd.f32 %v125, %v209
  %v211 = vpop.f32.mrf.mxu0
  %212 = vmatprep.mubr.f32.mxu0 0.0
  %213 = vmatmul.mubr.f32.gmra.mxu0 %v132
  %v214 = vpop.f32.mrf.mxu0
  %v215 = vadd.f32 %v125, %v214
  %v216 = vpop.f32.mrf.mxu0
  %217 = vmatprep.mubr.f32.mxu0 0.0
  %218 = vmatmul.mubr.f32.gmra.mxu0 %v135
  %v219 = vpop.f32.mrf.mxu0
  %v220 = vadd.f32 %v125, %v219
  %v221 = vpop.f32.mrf.mxu0
  %222 = vmatprep.mubr.f32.mxu0 0.0
  %223 = vmatmul.mubr.f32.gmra.mxu0 %v138
  %v224 = vpop.f32.mrf.mxu0
  %v225 = vadd.f32 %v125, %v224
  %v226 = vpop.f32.mrf.mxu0
  %227 = vmatprep.mubr.f32.mxu0 0.0
  %228 = vmatmul.mubr.f32.gmra.mxu0 %v141
  %v229 = vpop.f32.mrf.mxu0
  %v230 = vadd.f32 %v125, %v229
  %v231 = vpop.f32.mrf.mxu0
  %232 = vdwg.mxu0
  %vm233 = vcmp.ge.f32.partialorder %v210, 0.0
  %vm234 = vcmp.ge.f32.partialorder %v215, 0.0
  %vm235 = vcmp.ge.f32.partialorder %v220, 0.0
  %vm236 = vcmp.ge.f32.partialorder %v225, 0.0
  %vm237 = vcmp.ge.f32.partialorder %v230, 0.0
  %v238 = vmul.f32 %v210, 0.01
  %v239 = vmul.f32 %v215, 0.01
  %v240 = vmul.f32 %v220, 0.01
  %v241 = vmul.f32 %v225, 0.01
  %v242 = vmul.f32 %v230, 0.01
  %v243 = vsel %vm233, %v210, %v238
  %v244 = vsel %vm234, %v215, %v239
  %v245 = vsel %vm235, %v220, %v240
  %v246 = vsel %vm236, %v225, %v241
  %v247 = vsel %vm237, %v230, %v242
  %249 = vset.pattern.permute.xlu0 0
  %250 = vperm.xlu0 %249, %v37
  %v251 = vpop.permute.xlu0 %250
  %254 = vset.pattern.permute.xlu0 0
  %255 = vperm.xlu0 %254, %v38
  %v256 = vpop.permute.xlu0 %255
  %259 = vset.pattern.permute.xlu0 0
  %260 = vperm.xlu0 %259, %v39
  %v261 = vpop.permute.xlu0 %260
  %264 = vset.pattern.permute.xlu0 0
  %265 = vperm.xlu0 %264, %v40
  %v266 = vpop.permute.xlu0 %265
  %269 = vset.pattern.permute.xlu0 0
  %270 = vperm.xlu0 %269, %v41
  %v271 = vpop.permute.xlu0 %270
  %v273 = vmul.f32 %v243, %v251
  %v274 = vmul.f32 %v244, %v256
  %v275 = vmul.f32 %v245, %v261
  %v276 = vmul.f32 %v246, %v266
  %v277 = vmul.f32 %v247, %v271
  %278 = vst.msk [vmem:[#allocation2 + $0x1] sm:$0xff] %vm32, %v273
  %279 = vst.msk [vmem:[#allocation2 + $0x9] sm:$0xff] %vm32, %v274
  %280 = vst.msk [vmem:[#allocation2 + $0x11] sm:$0xff] %vm32, %v275
  %281 = vst.msk [vmem:[#allocation2 + $0x19] sm:$0xff] %vm32, %v276
  %282 = vst.msk [vmem:[#allocation2 + $0x21] sm:$0x3] %vm25, %v277
  %v283 = vld [vmem:[#allocation2] sm:$0xff]
  %v284 = vld [vmem:[#allocation2 + $0x8] sm:$0xff]
  %v285 = vld [vmem:[#allocation2 + $0x10] sm:$0xff]
  %v286 = vld [vmem:[#allocation2 + $0x18] sm:$0xff]
  %v287 = vld [vmem:[#allocation2 + $0x20] sm:$0x3]
  %v288 = vld [vmem:[%s4] sm:$0x3f]
  %v289 = vld [vmem:[#allocation2 + $0x1] sm:$0xff]
  %v290 = vld [vmem:[#allocation2 + $0x9] sm:$0xff]
  %v291 = vld [vmem:[#allocation2 + $0x11] sm:$0xff]
  %v292 = vld [vmem:[#allocation2 + $0x19] sm:$0xff]
  %v293 = vld [vmem:[#allocation2 + $0x21] sm:$0x3]
  %s294 = scalar_lea.vmem %s4, 8
  %v295 = vld [vmem:[%s294] sm:$0x3f]
  %v297 = vsel %vm32, %v295, 0
  %v300 = vsel %vm32, %v289, 0
  %v303 = vsel %vm32, %v290, 0
  %v306 = vsel %vm32, %v291, 0
  %v309 = vsel %vm32, %v292, 0
  %v312 = vsel %vm32, %v293, 0
  %314 = vmatprep.subr.mxu0 0.0
  %315 = vmatpush1.xpose.msra.mxu0 0.0
  %316 = vmatprep.subr.mxu0 0.0
  %317 = vmatpush1.xpose.msra.mxu0 0.0
  %318 = vmatprep.subr.mxu0 0.0
  %319 = vmatpush1.xpose.msra.mxu0 0.0
  %320 = vmatprep.subr.mxu0 0.0
  %321 = vmatpush1.xpose.msra.mxu0 0.0
  %322 = vmatprep.subr.mxu0 0.0
  %323 = vmatpush1.xpose.msra.mxu0 0.0
  %324 = vmatprep.subr.mxu0 0.0
  %325 = vmatpush1.xpose.msra.mxu0 0.0
  %326 = vmatprep.subr.mxu0 0.0
  %327 = vmatpush1.xpose.msra.mxu0 0.0
  %328 = vmatprep.subr.mxu0 0.0
  %329 = vmatpush1.xpose.msra.mxu0 0.0
  %330 = vmatprep.subr.mxu0 0.0
  %331 = vmatpush1.xpose.msra.mxu0 0.0
  %332 = vmatprep.subr.mxu0 0.0
  %333 = vmatpush1.xpose.msra.mxu0 0.0
  %334 = vmatprep.subr.mxu0 0.0
  %335 = vmatpush1.xpose.msra.mxu0 0.0
  %336 = vmatprep.subr.mxu0 0.0
  %337 = vmatpush1.xpose.msra.mxu0 %v312
  %338 = vmatprep.subr.mxu0 0.0
  %339 = vmatpush1.xpose.msra.mxu0 %v309
  %340 = vmatprep.subr.mxu0 0.0
  %341 = vmatpush1.xpose.msra.mxu0 %v306
  %342 = vmatprep.subr.mxu0 0.0
  %343 = vmatpush1.xpose.msra.mxu0 %v303
  %344 = vmatprep.subr.mxu0 0.0
  %345 = vmatpush1.xpose.msra.mxu0 %v300
  %346 = vmatprep.subr.mxu0 0.0
  %347 = vmatpush2.xpose.msra.mxu0 0.0
  %348 = vmatprep.subr.mxu0 0.0
  %349 = vmatpush2.xpose.msra.mxu0 0.0
  %350 = vmatprep.subr.mxu0 0.0
  %351 = vmatpush2.xpose.msra.mxu0 0.0
  %352 = vmatprep.subr.mxu0 0.0
  %353 = vmatpush2.xpose.msra.mxu0 0.0
  %354 = vmatprep.subr.mxu0 0.0
  %355 = vmatpush2.xpose.msra.mxu0 0.0
  %356 = vmatprep.subr.mxu0 0.0
  %357 = vmatpush2.xpose.msra.mxu0 0.0
  %358 = vmatprep.subr.mxu0 0.0
  %359 = vmatpush2.xpose.msra.mxu0 0.0
  %360 = vmatprep.subr.mxu0 0.0
  %361 = vmatpush2.xpose.msra.mxu0 0.0
  %362 = vmatprep.subr.mxu0 0.0
  %363 = vmatpush2.xpose.msra.mxu0 0.0
  %364 = vmatprep.subr.mxu0 0.0
  %365 = vmatpush2.xpose.msra.mxu0 0.0
  %366 = vmatprep.subr.mxu0 0.0
  %367 = vmatpush2.xpose.msra.mxu0 0.0
  %368 = vmatprep.subr.mxu0 0.0
  %369 = vmatpush2.xpose.msra.mxu0 0.0
  %370 = vmatprep.subr.mxu0 0.0
  %371 = vmatpush2.xpose.msra.mxu0 0.0
  %372 = vmatprep.subr.mxu0 0.0
  %373 = vmatpush2.xpose.msra.mxu0 0.0
  %374 = vmatprep.subr.mxu0 0.0
  %375 = vmatpush2.xpose.msra.mxu0 0.0
  %376 = vmatprep.subr.mxu0 0.0
  %377 = vmatpush2.xpose.msra.mxu0 0.0
  %378 = vmatprep.mubr.f32.mxu0 0.0
  %379 = vmatmul.mubr.f32.gmra.mxu0 %v297
  %v380 = vpop.f32.mrf.mxu0
  %v381 = vadd.f32 0.0, %v380
  %v382 = vpop.f32.mrf.mxu0
  %383 = vdwg.mxu0
  %v385 = vsel %vm32, %v288, 0
  %v388 = vsel %vm32, %v283, 0
  %v391 = vsel %vm32, %v284, 0
  %v394 = vsel %vm32, %v285, 0
  %v397 = vsel %vm32, %v286, 0
  %v400 = vsel %vm32, %v287, 0
  %402 = vmatprep.subr.mxu0 0.0
  %403 = vmatpush1.xpose.msra.mxu0 0.0
  %404 = vmatprep.subr.mxu0 0.0
  %405 = vmatpush1.xpose.msra.mxu0 0.0
  %406 = vmatprep.subr.mxu0 0.0
  %407 = vmatpush1.xpose.msra.mxu0 0.0
  %408 = vmatprep.subr.mxu0 0.0
  %409 = vmatpush1.xpose.msra.mxu0 0.0
  %410 = vmatprep.subr.mxu0 0.0
  %411 = vmatpush1.xpose.msra.mxu0 0.0
  %412 = vmatprep.subr.mxu0 0.0
  %413 = vmatpush1.xpose.msra.mxu0 0.0
  %414 = vmatprep.subr.mxu0 0.0
  %415 = vmatpush1.xpose.msra.mxu0 0.0
  %416 = vmatprep.subr.mxu0 0.0
  %417 = vmatpush1.xpose.msra.mxu0 0.0
  %418 = vmatprep.subr.mxu0 0.0
  %419 = vmatpush1.xpose.msra.mxu0 0.0
  %420 = vmatprep.subr.mxu0 0.0
  %421 = vmatpush1.xpose.msra.mxu0 0.0
  %422 = vmatprep.subr.mxu0 0.0
  %423 = vmatpush1.xpose.msra.mxu0 0.0
  %424 = vmatprep.subr.mxu0 0.0
  %425 = vmatpush1.xpose.msra.mxu0 %v400
  %426 = vmatprep.subr.mxu0 0.0
  %427 = vmatpush1.xpose.msra.mxu0 %v397
  %428 = vmatprep.subr.mxu0 0.0
  %429 = vmatpush1.xpose.msra.mxu0 %v394
  %430 = vmatprep.subr.mxu0 0.0
  %431 = vmatpush1.xpose.msra.mxu0 %v391
  %432 = vmatprep.subr.mxu0 0.0
  %433 = vmatpush1.xpose.msra.mxu0 %v388
  %434 = vmatprep.subr.mxu0 0.0
  %435 = vmatpush2.xpose.msra.mxu0 0.0
  %436 = vmatprep.subr.mxu0 0.0
  %437 = vmatpush2.xpose.msra.mxu0 0.0
  %438 = vmatprep.subr.mxu0 0.0
  %439 = vmatpush2.xpose.msra.mxu0 0.0
  %440 = vmatprep.subr.mxu0 0.0
  %441 = vmatpush2.xpose.msra.mxu0 0.0
  %442 = vmatprep.subr.mxu0 0.0
  %443 = vmatpush2.xpose.msra.mxu0 0.0
  %444 = vmatprep.subr.mxu0 0.0
  %445 = vmatpush2.xpose.msra.mxu0 0.0
  %446 = vmatprep.subr.mxu0 0.0
  %447 = vmatpush2.xpose.msra.mxu0 0.0
  %448 = vmatprep.subr.mxu0 0.0
  %449 = vmatpush2.xpose.msra.mxu0 0.0
  %450 = vmatprep.subr.mxu0 0.0
  %451 = vmatpush2.xpose.msra.mxu0 0.0
  %452 = vmatprep.subr.mxu0 0.0
  %453 = vmatpush2.xpose.msra.mxu0 0.0
  %454 = vmatprep.subr.mxu0 0.0
  %455 = vmatpush2.xpose.msra.mxu0 0.0
  %456 = vmatprep.subr.mxu0 0.0
  %457 = vmatpush2.xpose.msra.mxu0 0.0
  %458 = vmatprep.subr.mxu0 0.0
  %459 = vmatpush2.xpose.msra.mxu0 0.0
  %460 = vmatprep.subr.mxu0 0.0
  %461 = vmatpush2.xpose.msra.mxu0 0.0
  %462 = vmatprep.subr.mxu0 0.0
  %463 = vmatpush2.xpose.msra.mxu0 0.0
  %464 = vmatprep.subr.mxu0 0.0
  %465 = vmatpush2.xpose.msra.mxu0 0.0
  %466 = vmatprep.mubr.f32.mxu0 0.0
  %467 = vmatmul.mubr.f32.gmra.mxu0 %v385
  %v468 = vpop.f32.mrf.mxu0
  %v469 = vadd.f32 %v381, %v468
  %v470 = vpop.f32.mrf.mxu0
  %471 = vdwg.mxu0
  %v472 = vld [vmem:[#allocation2 + $0x2] sm:$0xff]
  %v473 = vld [vmem:[#allocation2 + $0xa] sm:$0xff]
  %v474 = vld [vmem:[#allocation2 + $0x12] sm:$0xff]
  %v475 = vld [vmem:[#allocation2 + $0x1a] sm:$0xff]
  %v476 = vld [vmem:[#allocation2 + $0x22] sm:$0x3]
  %s477 = scalar_lea.vmem %s4, 16
  %v478 = vld [vmem:[%s477] sm:$0x3f]
  %v480 = vsel %vm32, %v478, 0
  %v483 = vsel %vm32, %v472, 0
  %v486 = vsel %vm32, %v473, 0
  %v489 = vsel %vm32, %v474, 0
  %v492 = vsel %vm32, %v475, 0
  %v495 = vsel %vm32, %v476, 0
  %497 = vmatprep.subr.mxu0 0.0
  %498 = vmatpush1.xpose.msra.mxu0 0.0
  %499 = vmatprep.subr.mxu0 0.0
  %500 = vmatpush1.xpose.msra.mxu0 0.0
  %501 = vmatprep.subr.mxu0 0.0
  %502 = vmatpush1.xpose.msra.mxu0 0.0
  %503 = vmatprep.subr.mxu0 0.0
  %504 = vmatpush1.xpose.msra.mxu0 0.0
  %505 = vmatprep.subr.mxu0 0.0
  %506 = vmatpush1.xpose.msra.mxu0 0.0
  %507 = vmatprep.subr.mxu0 0.0
  %508 = vmatpush1.xpose.msra.mxu0 0.0
  %509 = vmatprep.subr.mxu0 0.0
  %510 = vmatpush1.xpose.msra.mxu0 0.0
  %511 = vmatprep.subr.mxu0 0.0
  %512 = vmatpush1.xpose.msra.mxu0 0.0
  %513 = vmatprep.subr.mxu0 0.0
  %514 = vmatpush1.xpose.msra.mxu0 0.0
  %515 = vmatprep.subr.mxu0 0.0
  %516 = vmatpush1.xpose.msra.mxu0 0.0
  %517 = vmatprep.subr.mxu0 0.0
  %518 = vmatpush1.xpose.msra.mxu0 0.0
  %519 = vmatprep.subr.mxu0 0.0
  %520 = vmatpush1.xpose.msra.mxu0 %v495
  %521 = vmatprep.subr.mxu0 0.0
  %522 = vmatpush1.xpose.msra.mxu0 %v492
  %523 = vmatprep.subr.mxu0 0.0
  %524 = vmatpush1.xpose.msra.mxu0 %v489
  %525 = vmatprep.subr.mxu0 0.0
  %526 = vmatpush1.xpose.msra.mxu0 %v486
  %527 = vmatprep.subr.mxu0 0.0
  %528 = vmatpush1.xpose.msra.mxu0 %v483
  %529 = vmatprep.subr.mxu0 0.0
  %530 = vmatpush2.xpose.msra.mxu0 0.0
  %531 = vmatprep.subr.mxu0 0.0
  %532 = vmatpush2.xpose.msra.mxu0 0.0
  %533 = vmatprep.subr.mxu0 0.0
  %534 = vmatpush2.xpose.msra.mxu0 0.0
  %535 = vmatprep.subr.mxu0 0.0
  %536 = vmatpush2.xpose.msra.mxu0 0.0
  %537 = vmatprep.subr.mxu0 0.0
  %538 = vmatpush2.xpose.msra.mxu0 0.0
  %539 = vmatprep.subr.mxu0 0.0
  %540 = vmatpush2.xpose.msra.mxu0 0.0
  %541 = vmatprep.subr.mxu0 0.0
  %542 = vmatpush2.xpose.msra.mxu0 0.0
  %543 = vmatprep.subr.mxu0 0.0
  %544 = vmatpush2.xpose.msra.mxu0 0.0
  %545 = vmatprep.subr.mxu0 0.0
  %546 = vmatpush2.xpose.msra.mxu0 0.0
  %547 = vmatprep.subr.mxu0 0.0
  %548 = vmatpush2.xpose.msra.mxu0 0.0
  %549 = vmatprep.subr.mxu0 0.0
  %550 = vmatpush2.xpose.msra.mxu0 0.0
  %551 = vmatprep.subr.mxu0 0.0
  %552 = vmatpush2.xpose.msra.mxu0 0.0
  %553 = vmatprep.subr.mxu0 0.0
  %554 = vmatpush2.xpose.msra.mxu0 0.0
  %555 = vmatprep.subr.mxu0 0.0
  %556 = vmatpush2.xpose.msra.mxu0 0.0
  %557 = vmatprep.subr.mxu0 0.0
  %558 = vmatpush2.xpose.msra.mxu0 0.0
  %559 = vmatprep.subr.mxu0 0.0
  %560 = vmatpush2.xpose.msra.mxu0 0.0
  %561 = vmatprep.mubr.f32.mxu0 0.0
  %562 = vmatmul.mubr.f32.gmra.mxu0 %v480
  %v563 = vpop.f32.mrf.mxu0
  %v564 = vadd.f32 0.0, %v563
  %v565 = vpop.f32.mrf.mxu0
  %566 = vdwg.mxu0
  %v567 = vadd.f32 %v469, %v564
  %v568 = vld [vmem:[%s5] sm:$0x3f]
  %570 = vset.pattern.permute.xlu0 0
  %571 = vperm.xlu0 %570, %v568
  %v572 = vpop.permute.xlu0 %571
  %v574 = vadd.f32 %v567, %v572
  %vm575 = vcmask 275456
  %576 = vst.msk [vmem:[%s6] sm:$0x3f] %vm575, %v574
  // Predicated region
  $region26: #{tpu_custom_call.1} parent=0 // pred_check
    _
  $region27: #{tpu_custom_call.1} parent=0 // pred_check_branch
    %578 = sbr.rel (0) target = $region29
  $region28: #{tpu_custom_call.1} parent=0 // pred_region
    _
  $region29: #{tpu_custom_call.1} parent=0 // pred_fallthru
    _
  // Predicated region
  $region30: #{tpu_custom_call.1} parent=0 // pred_check
    _
  $region31: #{tpu_custom_call.1} parent=0 // pred_check_branch
    %580 = sbr.rel (0) target = $region33
  $region32: #{tpu_custom_call.1} parent=0 // pred_region
    _
  $region33: #{tpu_custom_call.1} parent=0 // pred_fallthru
    _

</llo_original>
